<compile_context>
chip_gen: v7x
topology: tpu7x:2x2x1
jax: 0.10.0
libtpu: 0.0.40
codegen_flags: <defaults>
</compile_context>

<pallas_src>
import functools

import jax
import jax.numpy as jnp
from jax.experimental import pallas as pl
from jax.experimental.pallas import tpu as pltpu

_LANE = 128
_MIB = 1024 * 1024


def cosloss_kernel(y_ref, feat_ref, loss_ref, *, scale, alpha, batch):
    """One batch tile: margin logits + stable CE, per-example loss out.

    y_ref   : (TILE_B, 1) int32 labels (VMEM)
    feat_ref: (TILE_B, C) logits in native dtype (VMEM)
    loss_ref: (TILE_B, 1) f32 per-example loss (ragged / OOB rows -> 0)
    """
    pid = pl.program_id(0)
    tb, c = feat_ref.shape

    labels = y_ref[...]                                   # (TILE_B, 1) int32
    cls_ids = jax.lax.broadcasted_iota(jnp.int32, (tb, c), 1)
    is_label = cls_ids == labels                          # (TILE_B, C) bool

    # value = scale*feat - scale*alpha at the label lane only.
    # NOTE: the module's `+ phi` (a constant added to every logit) cancels
    # exactly in `lse - value[label]`, so it is omitted.
    value = scale * feat_ref[...].astype(jnp.float32)
    value = jnp.where(is_label, value - (scale * alpha), value)

    # Numerically stable softmax cross-entropy over the class (lane) axis.
    m = jnp.max(value, axis=-1, keepdims=True)
    lse = m + jnp.log(jnp.sum(jnp.exp(value - m), axis=-1, keepdims=True))
    tgt = jnp.sum(jnp.where(is_label, value, 0.0), axis=-1, keepdims=True)
    per_example = lse - tgt                               # (TILE_B, 1)

    # Rows past the real batch (ragged last block) read unspecified HBM data;
    # a *select* (not arithmetic masking) keeps their contribution at 0.
    row = pid * tb + jax.lax.broadcasted_iota(jnp.int32, (tb, 1), 0)
    loss_ref[...] = jnp.where(row < batch, per_example, 0.0)


def _round_up(x, m):
    return (x + m - 1) // m * m


def _vmem_budget_and_limit():
    """Generation-aware per-step VMEM budget and scoped-VMEM limit (bytes)."""
    try:
        cap = int(getattr(pltpu.get_tpu_info(), "vmem_capacity_bytes",
                          64 * _MIB))
    except Exception:  # no TPU info at trace time -> be conservative (v7x TC)
        cap = 64 * _MIB
    # v5e/v6e report 128 MiB physical -> ~26 MiB working-set budget (scoped
    # limit raised explicitly below); v7x has only 64 MiB per TC -> ~16 MiB.
    budget = max(12 * _MIB, min(26 * _MIB, cap // 4))
    limit = int(min(cap // 2, budget + 8 * _MIB))
    return budget, limit


def _choose_tile_b(batch, num_cls, itemsize, budget):
    """Largest batch tile whose pipelined working set fits `budget` bytes.

    Honest per-row accounting (everything lane-pads to 128 in VMEM/vregs):
      * n_buf pipelined copies of the native-dtype feat tile,
      * ~4 live f32 (tile_b, C) temporaries,
      * one label mask,
      * a handful of (tile_b, 1)-shaped column slabs (labels, output,
        m/lse/tgt/row), each ~512 B/row after lane padding.
    Returns (tile_b, n_buf).
    """
    base = 8 if itemsize >= 4 else (16 if itemsize == 2 else 32)
    lane_c = _round_up(num_cls, _LANE)

    def fit(n_buf):
        per_row = (n_buf * lane_c * itemsize   # pipelined feat tiles
                   + 4 * lane_c * 4            # live f32 (tb, C) temporaries
                   + lane_c                    # label mask
                   + 6 * 512)                  # (tb, 1)-shaped column slabs
        tb = budget // max(per_row, 1)
        return int(max(base, min(4096, (tb // base) * base)))

    n_buf = 2
    tb = fit(n_buf)
    if tb <= 64:             # large-C regime: tiny tiles -> deepen pipelining
        n_buf = 3
        tb = fit(n_buf)

    # Keep >= 2 grid blocks so the "parallel" batch axis can shard across both
    # TensorCores on v7x (costs at most one extra ~0.35us step elsewhere).
    if batch > base:
        tb = min(tb, _round_up((batch + 1) // 2, base))
    tb = max(base, min(tb, _round_up(batch, base)))
    return int(tb), n_buf


def cos_loss(feat, y, phi=None, *, scale=15.0, alpha=0.1, tile_b=None):
    """feat: (B, C) any float dtype, y: (B,) int, phi: (1,) f32 (its value
    cancels exactly in the cross-entropy, so it is not read). Scalar f32 loss."""
    del phi  # constant-per-row logit offset -> no effect on the CE loss
    B, C = feat.shape
    itemsize = jnp.dtype(feat.dtype).itemsize

    budget, vmem_limit = _vmem_budget_and_limit()
    if tile_b is None:
        tile_b, n_buf = _choose_tile_b(B, C, itemsize, budget)
    else:
        n_buf = 2
    num_blocks = pl.cdiv(B, tile_b)

    y2d = y.reshape(B, 1).astype(jnp.int32)

    kern = functools.partial(
        cosloss_kernel, scale=float(scale), alpha=float(alpha), batch=B)

    if n_buf > 2:
        feat_spec = pl.BlockSpec((tile_b, C), lambda i: (i, 0),
                                 pipeline_mode=pl.Buffered(n_buf))
    else:
        feat_spec = pl.BlockSpec((tile_b, C), lambda i: (i, 0))

    grid_spec = pltpu.PrefetchScalarGridSpec(
        num_scalar_prefetch=0,
        grid=(num_blocks,),
        in_specs=[
            pl.BlockSpec((tile_b, 1), lambda i: (i, 0)),   # labels
            feat_spec,                                      # feat tile
        ],
        out_specs=pl.BlockSpec((tile_b, 1), lambda i: (i, 0)),
    )

    per_example = pl.pallas_call(
        kern,
        out_shape=jax.ShapeDtypeStruct((B, 1), jnp.float32),
        grid_spec=grid_spec,
        compiler_params=pltpu.CompilerParams(
            dimension_semantics=("parallel",),   # megacore sharding on v7x
            vmem_limit_bytes=vmem_limit),
    )(y2d, feat)

    # Tiny final reduction in the wrapper (masked rows already contribute 0).
    return jnp.sum(per_example) / B


def cos_loss_ref(feat, y, phi, *, scale=15.0, alpha=0.1):
    """Pure-JAX reference mirroring the PyTorch forward (phi included)."""
    B, C = feat.shape
    onehot = jax.nn.one_hot(y, C, dtype=jnp.float32)
    f = feat.astype(jnp.float32) + phi[0]
    value = scale * (onehot * (f - alpha) + (1.0 - onehot) * f)
    logz = jax.scipy.special.logsumexp(value, axis=-1)
    tgt = jnp.sum(value * onehot, axis=-1)
    return jnp.mean(logz - tgt)


if __name__ == "__main__":
    s = 15.0
    alpha = 0.1

    key = jax.random.PRNGKey(0)
    k_feat, k_y, k_phi, k_feat2, k_y2 = jax.random.split(key, 5)

    # deterministic init of the phi parameter (module inits uniform over [-s, s])
    phi = jax.random.uniform(k_phi, (1,), minval=-s, maxval=s, dtype=jnp.float32)

    # Case 1: module defaults (batch=8, num_cls=10), f32, single tile.
    batch, num_cls = 8, 10
    feat = jax.random.normal(k_feat, (batch, num_cls), dtype=jnp.float32)
    y = jax.random.randint(k_y, (batch,), 0, num_cls, dtype=jnp.int32)

    out = cos_loss(feat, y, phi, scale=s, alpha=alpha)
    out = jax.block_until_ready(out)
    ref = cos_loss_ref(feat, y, phi, scale=s, alpha=alpha)
    assert jnp.allclose(out, ref, rtol=1e-5, atol=2e-4), (out, ref)

    # Case 2: bf16 ingest, 2-block grid, batch NOT a multiple of the tile
    # (exercises the no-pad ragged last block).
    batch2, num_cls2 = 24, 12
    feat2 = jax.random.normal(k_feat2, (batch2, num_cls2), dtype=jnp.bfloat16)
    y2 = jax.random.randint(k_y2, (batch2,), 0, num_cls2, dtype=jnp.int32)

    out2 = cos_loss(feat2, y2, phi, scale=s, alpha=alpha, tile_b=16)
    out2 = jax.block_until_ready(out2)
    ref2 = cos_loss_ref(feat2, y2, phi, scale=s, alpha=alpha)
    assert jnp.allclose(out2, ref2, rtol=1e-4, atol=1e-3), (out2, ref2)

    print("KERNEL_OK")
</pallas_src>

<mosaic_0001>
module attributes {stable_mosaic.version = 11 : i64} {
  func.func @cosloss_kernel(%arg0: i32, %arg1: memref<8x1xi32, #tpu.memory_space<vmem>>, %arg2: memref<8x10xf32, #tpu.memory_space<vmem>>, %arg3: memref<8x1xf32, #tpu.memory_space<vmem>>) attributes {dimension_semantics = [#tpu.dimension_semantics<parallel>], iteration_bounds = array<i64: 1>, scalar_prefetch = 0 : i64, scratch_operands = 0 : i64, tpu.core_type = #tpu.core_type<tc>, window_params = [{transform_indices = @transform_0, window_bounds = array<i64: 8, 1>}, {transform_indices = @transform_1, window_bounds = array<i64: 8, 10>}, {transform_indices = @transform_2, window_bounds = array<i64: 8, 1>}]} {
    %c0 = arith.constant 0 : index
    %c0_0 = arith.constant 0 : index
    %0 = vector.load %arg1[%c0, %c0_0] : memref<8x1xi32, #tpu.memory_space<vmem>>, vector<8x1xi32>
    %1 = tpu.iota {dimensions = array<i32: 1>} : vector<8x10xi32>
    %2 = vector.broadcast %0 : vector<8x1xi32> to vector<8x10xi32>
    %3 = arith.cmpi eq, %1, %2 : vector<8x10xi32>
    %c0_1 = arith.constant 0 : index
    %c0_2 = arith.constant 0 : index
    %4 = vector.load %arg2[%c0_1, %c0_2] : memref<8x10xf32, #tpu.memory_space<vmem>>, vector<8x10xf32>
    %cst = arith.constant 1.500000e+01 : f32
    %5 = vector.broadcast %cst : f32 to vector<8x10xf32>
    %6 = arith.mulf %5, %4 : vector<8x10xf32>
    %cst_3 = arith.constant 1.500000e+00 : f32
    %7 = vector.broadcast %cst_3 : f32 to vector<8x10xf32>
    %8 = arith.subf %6, %7 : vector<8x10xf32>
    %9 = arith.select %3, %8, %6 : vector<8x10xi1>, vector<8x10xf32>
    %cst_4 = arith.constant dense<0xFF800000> : vector<8xf32>
    %10 = vector.multi_reduction <maximumf>, %9, %cst_4 [1] : vector<8x10xf32> to vector<8xf32>
    %11 = vector.shape_cast %10 : vector<8xf32> to vector<8x1xf32>
    %12 = vector.broadcast %11 : vector<8x1xf32> to vector<8x10xf32>
    %13 = arith.subf %9, %12 : vector<8x10xf32>
    %14 = math.exp %13 : vector<8x10xf32>
    %cst_5 = arith.constant dense<0.000000e+00> : vector<8xf32>
    %15 = vector.multi_reduction <add>, %14, %cst_5 [1] : vector<8x10xf32> to vector<8xf32>
    %16 = vector.shape_cast %15 : vector<8xf32> to vector<8x1xf32>
    %17 = math.log %16 : vector<8x1xf32>
    %18 = arith.addf %11, %17 : vector<8x1xf32>
    %cst_6 = arith.constant 0.000000e+00 : f32
    %19 = vector.broadcast %cst_6 : f32 to vector<8x10xf32>
    %20 = arith.select %3, %9, %19 : vector<8x10xi1>, vector<8x10xf32>
    %cst_7 = arith.constant dense<0.000000e+00> : vector<8xf32>
    %21 = vector.multi_reduction <add>, %20, %cst_7 [1] : vector<8x10xf32> to vector<8xf32>
    %22 = vector.shape_cast %21 : vector<8xf32> to vector<8x1xf32>
    %23 = arith.subf %18, %22 : vector<8x1xf32>
    %c8_i32 = arith.constant 8 : i32
    %24 = arith.muli %arg0, %c8_i32 : i32
    %25 = tpu.iota {dimensions = array<i32: 0>} : vector<8x1xi32>
    %26 = vector.broadcast %24 : i32 to vector<8x1xi32>
    %27 = arith.addi %26, %25 : vector<8x1xi32>
    %c8_i32_8 = arith.constant 8 : i32
    %28 = vector.broadcast %c8_i32_8 : i32 to vector<8x1xi32>
    %29 = arith.cmpi slt, %27, %28 : vector<8x1xi32>
    %cst_9 = arith.constant 0.000000e+00 : f32
    %30 = vector.broadcast %cst_9 : f32 to vector<8x1xf32>
    %31 = arith.select %29, %23, %30 : vector<8x1xi1>, vector<8x1xf32>
    %c0_10 = arith.constant 0 : index
    %c0_11 = arith.constant 0 : index
    %32 = vector.load %arg3[%c0_10, %c0_11] : memref<8x1xf32, #tpu.memory_space<vmem>>, vector<8x1xf32>
    tpu.vector_store %arg3[%c0_10, %c0_11], %31 {strides = array<i32>} : memref<8x1xf32, #tpu.memory_space<vmem>>, vector<8x1xf32>,
    return
  }
  func.func @transform_0(%arg0: i32) -> (i32, i32) {
    %c0_i32 = arith.constant 0 : i32
    %c0_i32_0 = arith.constant 0 : i32
    return %arg0, %c0_i32 : i32, i32
  }
  func.func @transform_1(%arg0: i32) -> (i32, i32) {
    %c0_i32 = arith.constant 0 : i32
    %c0_i32_0 = arith.constant 0 : i32
    return %arg0, %c0_i32 : i32, i32
  }
  func.func @transform_2(%arg0: i32) -> (i32, i32) {
    %c0_i32 = arith.constant 0 : i32
    %c0_i32_0 = arith.constant 0 : i32
    return %arg0, %c0_i32 : i32, i32
  }
}

</mosaic_0001>

<llo_original>
// kernel: tpu_custom_call.1
$region0: #{tpu_custom_call.1}
  #allocation0 [shape = 'u32[]', space=smem, size = 0x4, offset = 0x4, fixed_abs, tag = 'smem constant byte address 0x4 - core index']
  #allocation1 [shape = 'u32[144,128]{1,0:T(1,128)}', space=vmem, size = 0x12000, scoped, tag = 'internal scratch']
  %s0 = inlined_call_operand.vmem [shape: s32[8,1], index: 0, kind: input, shape index: {}]
  %s1 = inlined_call_operand.vmem [shape: f32[8,10], index: 1, kind: input, shape index: {}]
  %s2 = inlined_call_operand.vmem [shape: f32[8,1], index: 2, kind: output, shape index: {}]
  %s3 = sld [smem:[#allocation0]]
  $region18: #{tpu_custom_call.1} parent=0
    _
  %s5 = ssub.s32 1, %s3
  %s6 = scalar_select 0, %s5, %s3
  // Predicated region
  $region2: #{tpu_custom_call.1} parent=0 // pred_check
    _
  $region3: #{tpu_custom_call.1} parent=0 // pred_check_branch
    %8 = sbr.rel (0) target = $region5
  $region4: #{tpu_custom_call.1} parent=0 // pred_region
    _
  $region5: #{tpu_custom_call.1} parent=0 // pred_fallthru
    _
  // Predicated region
  $region6: #{tpu_custom_call.1} parent=0 // pred_check
    _
  $region7: #{tpu_custom_call.1} parent=0 // pred_check_branch
    %10 = sbr.rel (0) target = $region9
  $region8: #{tpu_custom_call.1} parent=0 // pred_region
    _
  $region9: #{tpu_custom_call.1} parent=0 // pred_fallthru
    _
  %v11 = vld [vmem:[%s0] sm:$0xff]
  %v12 = vlaneseq
  %v13 = vand.u32 %v12, 127
  %14 = vset.pattern.permute.xlu0 0
  %15 = vperm.xlu0 %14, %v11
  %v16 = vpop.permute.xlu0 %15
  %vm17 = vcmp.eq.s32.totalorder %v13, %v16
  %v18 = vld [vmem:[%s1] sm:$0xff]
  %v19 = vmul.f32 %v18, 15.0
  %v20 = vsub.f32 %v19, 1.5
  %v21 = vsel %vm17, %v20, %v19
  %vm22 = vcmask 80896
  %v23 = vsel %vm22, %v21, -inf
  %24 = vmax.xlane.f32.xlu0 %v23
  %v25 = vpop.xlane.xlu0 %24
  %v26 = vsub.f32 %v21, %v25
  %v27 = vmul.f32 %v26, 1.442695
  %v28 = vpow.pop %v27
  %v29 = vsel %vm22, %v28, 0.0
  %30 = vadd.xlane.f32.xlu0 %v29
  %v31 = vpop.xlane.xlu0 %30
  %v32 = vlog2.pop %v31
  %v33 = vmul.f32 %v32, 0.6931472
  %v34 = vadd.f32 %v25, %v33
  %v35 = vsel %vm17, %v20, 0.0
  %v36 = vsel %vm22, %v35, 0.0
  %37 = vadd.xlane.f32.xlu0 %v36
  %v38 = vpop.xlane.xlu0 %37
  %v39 = vsub.f32 %v34, %v38
  %s40 = smul.u32 0, 8
  %v41 = vlaneseq
  %v42 = vshrl.u32 %v41, 7
  %v43 = vstv %s40
  %v44 = vadd.s32 %v43, %v42
  %vm45 = vcmp.lt.s32.totalorder %v44, 8
  %v46 = vsel %vm45, %v39, 0.0
  %vm47 = vcmask 7168
  %48 = vst.msk [vmem:[%s2] sm:$0xff] %vm47, %v46
  // Predicated region
  $region10: #{tpu_custom_call.1} parent=0 // pred_check
    _
  $region11: #{tpu_custom_call.1} parent=0 // pred_check_branch
    %50 = sbr.rel (0) target = $region13
  $region12: #{tpu_custom_call.1} parent=0 // pred_region
    _
  $region13: #{tpu_custom_call.1} parent=0 // pred_fallthru
    _
  // Predicated region
  $region14: #{tpu_custom_call.1} parent=0 // pred_check
    _
  $region15: #{tpu_custom_call.1} parent=0 // pred_check_branch
    %52 = sbr.rel (0) target = $region17
  $region16: #{tpu_custom_call.1} parent=0 // pred_region
    _
  $region17: #{tpu_custom_call.1} parent=0 // pred_fallthru
    _

</llo_original>
